<compile_context>
chip_gen: v5e
topology: v5e:2x2
jax: 0.10.0
libtpu: 0.0.40
codegen_flags: <defaults>
</compile_context>

<pallas_src>
import functools

import jax
import jax.numpy as jnp
from jax.experimental import pallas as pl
from jax.experimental.pallas import tpu as pltpu


def _round_up(v, m):
    return (v + m - 1) // m * m


def _mlp2_kernel(x_ref, w1_ref, w2_ref, b_ref, o_ref, *, h_pad, c_pad):
    # fc1: (TB, Din_p) @ (Din_p, H_p) on the MXU, f32 accumulation.
    h = jnp.dot(x_ref[...], w1_ref[...], preferred_element_type=jnp.float32)
    h = h + b_ref[0:1, :h_pad]                      # b1 broadcast over rows
    # fc2: cast activations back to bf16 for the MXU, accumulate in f32.
    out = jnp.dot(h.astype(w2_ref.dtype), w2_ref[...],
                  preferred_element_type=jnp.float32)
    out = out + b_ref[1:2, :c_pad]                  # b2 broadcast over rows
    o_ref[...] = out.astype(o_ref.dtype)            # lane-dense (TB, C_p) store


def classification1_forward(x, w1, b1, w2, b2, *, tb=128):
    """Fused 2-layer linear forward (= fc2(fc1(x))).

    x:  (..., input_size) f32
    w1: (input_size, hidden_size) f32      b1: (hidden_size,) f32
    w2: (hidden_size, num_classes) f32     b2: (num_classes,) f32
    returns (..., num_classes) f32
    """
    lead_shape = x.shape[:-1]
    d_in = x.shape[-1]
    hidden = w1.shape[1]
    n_cls = w2.shape[1]

    x2 = x.reshape(-1, d_in)
    B = x2.shape[0]

    # Lane-dense (multiple-of-128) feature dims; sublane-aligned batch tiles.
    d_in_p = _round_up(d_in, 128)
    h_p = _round_up(hidden, 128)
    c_p = _round_up(n_cls, 128)
    pad = max(h_p, c_p)

    tb = min(tb, _round_up(B, 8))          # batch tile (multiple of 8 sublanes)
    b_p = _round_up(B, tb)

    # Zero-pad + cast matmul operands to bf16 (padded zeros contribute nothing).
    x_p = jnp.zeros((b_p, d_in_p), jnp.bfloat16).at[:B, :d_in].set(
        x2.astype(jnp.bfloat16))
    w1_p = jnp.zeros((d_in_p, h_p), jnp.bfloat16).at[:d_in, :hidden].set(
        w1.astype(jnp.bfloat16))
    w2_p = jnp.zeros((h_p, c_p), jnp.bfloat16).at[:hidden, :n_cls].set(
        w2.astype(jnp.bfloat16))

    # Pack both biases (kept in f32) into one lane-padded buffer -> single DMA.
    b_pk = jnp.zeros((2, pad), jnp.float32)
    b_pk = b_pk.at[0, :hidden].set(b1.reshape(-1))
    b_pk = b_pk.at[1, :n_cls].set(b2.reshape(-1))

    kernel = functools.partial(_mlp2_kernel, h_pad=h_p, c_pad=c_p)

    out_p = pl.pallas_call(
        kernel,
        out_shape=jax.ShapeDtypeStruct((b_p, c_p), jnp.float32),
        grid=(b_p // tb,),
        in_specs=[
            pl.BlockSpec((tb, d_in_p), lambda i: (i, 0)),    # x: batch-tiled
            pl.BlockSpec((d_in_p, h_p), lambda i: (0, 0)),   # w1: VMEM-resident
            pl.BlockSpec((h_p, c_p), lambda i: (0, 0)),      # w2: VMEM-resident
            pl.BlockSpec((2, pad), lambda i: (0, 0)),        # packed biases
        ],
        out_specs=pl.BlockSpec((tb, c_p), lambda i: (i, 0)), # lane-dense output
        compiler_params=pltpu.CompilerParams(
            dimension_semantics=("parallel",)),
    )(x_p, w1_p, w2_p, b_pk)

    return out_p[:B, :n_cls].reshape(*lead_shape, n_cls)


def init_params(key, input_size, hidden_size, num_classes):
    """Mimic nn.Linear's U(-1/sqrt(fan_in), 1/sqrt(fan_in)) init.

    Weights are returned as (in_features, out_features)."""
    ks = jax.random.split(key, 4)

    def linear(kw, kb, fan_in, fan_out):
        bound = 1.0 / jnp.sqrt(fan_in)
        w = jax.random.uniform(kw, (fan_in, fan_out), jnp.float32, -bound, bound)
        b = jax.random.uniform(kb, (fan_out,), jnp.float32, -bound, bound)
        return w, b

    w1, b1 = linear(ks[0], ks[1], input_size, hidden_size)
    w2, b2 = linear(ks[2], ks[3], hidden_size, num_classes)
    return w1, b1, w2, b2


if __name__ == "__main__":
    # Small shapes consistent with the module's forward.
    batch = 8
    input_size = 32
    hidden_size = 64
    num_classes = 10
    # num_layers is unused by the PyTorch forward -> intentionally ignored.

    key = jax.random.PRNGKey(0)
    kx, kp = jax.random.split(key)
    x = jax.random.normal(kx, (batch, input_size), jnp.float32)
    w1, b1, w2, b2 = init_params(kp, input_size, hidden_size, num_classes)

    fwd = jax.jit(classification1_forward)
    out = fwd(x, w1, b1, w2, b2)
    out = jax.block_until_ready(out)

    # Reference in plain f32 JAX. Kernel uses bf16 MXU operands with f32
    # accumulation, so compare with a bf16-level tolerance.
    ref = (x @ w1 + b1) @ w2 + b2
    assert out.shape == (batch, num_classes), out.shape
    assert jnp.allclose(out, ref, atol=2e-2, rtol=2e-2), (
        float(jnp.max(jnp.abs(out - ref))))

    print("KERNEL_OK")
</pallas_src>

<mosaic_0001>
module attributes {stable_mosaic.version = 11 : i64} {
  func.func @_mlp2_kernel(%arg0: i32, %arg1: memref<8x128xbf16, #tpu.memory_space<vmem>>, %arg2: memref<128x128xbf16, #tpu.memory_space<vmem>>, %arg3: memref<128x128xbf16, #tpu.memory_space<vmem>>, %arg4: memref<2x128xf32, #tpu.memory_space<vmem>>, %arg5: memref<8x128xf32, #tpu.memory_space<vmem>>) attributes {dimension_semantics = [#tpu.dimension_semantics<parallel>], iteration_bounds = array<i64: 1>, scalar_prefetch = 0 : i64, scratch_operands = 0 : i64, tpu.core_type = #tpu.core_type<tc>, window_params = [{transform_indices = @transform_0, window_bounds = array<i64: 8, 128>}, {pipeline_mode = #tpu.pipeline_mode<synchronous>, transform_indices = @transform_1, window_bounds = array<i64: 128, 128>}, {pipeline_mode = #tpu.pipeline_mode<synchronous>, transform_indices = @transform_2, window_bounds = array<i64: 128, 128>}, {pipeline_mode = #tpu.pipeline_mode<synchronous>, transform_indices = @transform_3, window_bounds = array<i64: 2, 128>}, {transform_indices = @transform_4, window_bounds = array<i64: 8, 128>}]} {
    %c0 = arith.constant 0 : index
    %c0_0 = arith.constant 0 : index
    %0 = vector.load %arg1[%c0, %c0_0] : memref<8x128xbf16, #tpu.memory_space<vmem>>, vector<8x128xbf16>
    %c0_1 = arith.constant 0 : index
    %c0_2 = arith.constant 0 : index
    %1 = vector.load %arg2[%c0_1, %c0_2] : memref<128x128xbf16, #tpu.memory_space<vmem>>, vector<128x128xbf16>
    %cst = arith.constant dense<0.000000e+00> : vector<8x128xf32>
    %2 = tpu.matmul %0, %1, %cst {dimension_numbers = #tpu.dot_dimension_numbers<[1], [0], [0], [1], [0, 0, 1, 1], [], []>} : vector<8x128xbf16>, vector<128x128xbf16>, vector<8x128xf32> -> vector<8x128xf32>
    %c0_3 = arith.constant 0 : index
    %c0_4 = arith.constant 0 : index
    %3 = vector.load %arg4[%c0_3, %c0_4] : memref<2x128xf32, #tpu.memory_space<vmem>>, vector<1x128xf32>
    %4 = vector.broadcast %3 : vector<1x128xf32> to vector<8x128xf32>
    %5 = arith.addf %2, %4 : vector<8x128xf32>
    %6 = arith.truncf %5 : vector<8x128xf32> to vector<8x128xbf16>
    %c0_5 = arith.constant 0 : index
    %c0_6 = arith.constant 0 : index
    %7 = vector.load %arg3[%c0_5, %c0_6] : memref<128x128xbf16, #tpu.memory_space<vmem>>, vector<128x128xbf16>
    %cst_7 = arith.constant dense<0.000000e+00> : vector<8x128xf32>
    %8 = tpu.matmul %6, %7, %cst_7 {dimension_numbers = #tpu.dot_dimension_numbers<[1], [0], [0], [1], [0, 0, 1, 1], [], []>} : vector<8x128xbf16>, vector<128x128xbf16>, vector<8x128xf32> -> vector<8x128xf32>
    %c1 = arith.constant 1 : index
    %c0_8 = arith.constant 0 : index
    %9 = vector.load %arg4[%c1, %c0_8] : memref<2x128xf32, #tpu.memory_space<vmem>>, vector<1x128xf32>
    %10 = vector.broadcast %9 : vector<1x128xf32> to vector<8x128xf32>
    %11 = arith.addf %8, %10 : vector<8x128xf32>
    %c0_9 = arith.constant 0 : index
    %c0_10 = arith.constant 0 : index
    %12 = vector.load %arg5[%c0_9, %c0_10] : memref<8x128xf32, #tpu.memory_space<vmem>>, vector<8x128xf32>
    tpu.vector_store %arg5[%c0_9, %c0_10], %11 {strides = array<i32>} : memref<8x128xf32, #tpu.memory_space<vmem>>, vector<8x128xf32>,
    return
  }
  func.func @transform_0(%arg0: i32) -> (i32, i32) {
    %c0_i32 = arith.constant 0 : i32
    %c0_i32_0 = arith.constant 0 : i32
    return %arg0, %c0_i32 : i32, i32
  }
  func.func @transform_1(%arg0: i32) -> (i32, i32) {
    %c0_i32 = arith.constant 0 : i32
    %c0_i32_0 = arith.constant 0 : i32
    %c0_i32_1 = arith.constant 0 : i32
    return %c0_i32, %c0_i32_0 : i32, i32
  }
  func.func @transform_2(%arg0: i32) -> (i32, i32) {
    %c0_i32 = arith.constant 0 : i32
    %c0_i32_0 = arith.constant 0 : i32
    %c0_i32_1 = arith.constant 0 : i32
    return %c0_i32, %c0_i32_0 : i32, i32
  }
  func.func @transform_3(%arg0: i32) -> (i32, i32) {
    %c0_i32 = arith.constant 0 : i32
    %c0_i32_0 = arith.constant 0 : i32
    %c0_i32_1 = arith.constant 0 : i32
    return %c0_i32, %c0_i32_0 : i32, i32
  }
  func.func @transform_4(%arg0: i32) -> (i32, i32) {
    %c0_i32 = arith.constant 0 : i32
    %c0_i32_0 = arith.constant 0 : i32
    return %arg0, %c0_i32 : i32, i32
  }
}

</mosaic_0001>

<llo_original>
// kernel: classification1_forward.1
$region0: #{classification1_forward.1}
  #allocation0 [shape = 'u32[]', space=smem, size = 0x4, offset = 0x4, fixed_abs, tag = 'smem constant byte address 0x4 - core index']
  #allocation1 [shape = 'u32[72,128]{1,0:T(1,128)}', space=vmem, size = 0x9000, scoped, tag = 'internal scratch']
  %s0 = inlined_call_operand.vmem [shape: bf16[8,128], index: 0, kind: input, shape index: {}]
  %s1 = inlined_call_operand.vmem [shape: bf16[128,128], index: 1, kind: input, shape index: {}]
  %s2 = inlined_call_operand.vmem [shape: bf16[128,128], index: 2, kind: input, shape index: {}]
  %s3 = inlined_call_operand.vmem [shape: f32[2,128], index: 3, kind: input, shape index: {}]
  %s4 = inlined_call_operand.hbm [shape: f32[8,128], index: 4, kind: output, shape index: {}]
  %s5 = sld [smem:[#allocation0]]
  $region26: #{classification1_forward.1} parent=0
    _
  %s7 = ssub.s32 1, %s5
  %s8 = scalar_select 0, %s7, %s5
  $region1: #{classification1_forward.1} parent=0
    #allocation2 [shape = 'u8[4096]{0}', space=vmem, size = 0x1000, scoped, tag = 'output window, operand 0, single buffered']
    #allocation3 [shape = 's32[1]{0}', space=sflag, size = 0x4, scoped, tag = 'scoped memory for classification1_forward.1']
    %9 = vsyncpa [#allocation3], 0
    // Predicated region
    $region2: #{classification1_forward.1} parent=1 // pred_check
      _
    $region3: #{classification1_forward.1} parent=1 // pred_check_branch
      %11 = sbr.rel (0) target = $region5
    $region4: #{classification1_forward.1} parent=1 // pred_region
      _
    $region5: #{classification1_forward.1} parent=1 // pred_fallthru
      _
    // Predicated region
    $region6: #{classification1_forward.1} parent=1 // pred_check
      _
    $region7: #{classification1_forward.1} parent=1 // pred_check_branch
      %13 = sbr.rel (0) target = $region9
    $region8: #{classification1_forward.1} parent=1 // pred_region
      _
    $region9: #{classification1_forward.1} parent=1 // pred_fallthru
      _
    // Predicated region
    $region10: #{classification1_forward.1} parent=1 // pred_check
      _
    $region11: #{classification1_forward.1} parent=1 // pred_check_branch
      %15 = sbr.rel (0) target = $region13
    $region12: #{classification1_forward.1} parent=1 // pred_region
      _
    $region13: #{classification1_forward.1} parent=1 // pred_fallthru
      _
    // Predicated region
    $region14: #{classification1_forward.1} parent=1 // pred_check
      _
    $region15: #{classification1_forward.1} parent=1 // pred_check_branch
      %17 = sbr.rel (0) target = $region17
    $region16: #{classification1_forward.1} parent=1 // pred_region
      _
    $region17: #{classification1_forward.1} parent=1 // pred_fallthru
      _
    %v18 = vld [vmem:[%s0] sm:$0xf]
    %v19 = vld [vmem:[%s1] sm:$0xf]
    %v20 = vld [vmem:[%s1 + $0x4] sm:$0xf]
    %v21 = vld [vmem:[%s1 + $0x8] sm:$0xf]
    %v22 = vld [vmem:[%s1 + $0xc] sm:$0xf]
    %v23 = vld [vmem:[%s1 + $0x10] sm:$0xf]
    %v24 = vld [vmem:[%s1 + $0x14] sm:$0xf]
    %v25 = vld [vmem:[%s1 + $0x18] sm:$0xf]
    %v26 = vld [vmem:[%s1 + $0x1c] sm:$0xf]
    %v27 = vld [vmem:[%s1 + $0x20] sm:$0xf]
    %v28 = vld [vmem:[%s1 + $0x24] sm:$0xf]
    %v29 = vld [vmem:[%s1 + $0x28] sm:$0xf]
    %v30 = vld [vmem:[%s1 + $0x2c] sm:$0xf]
    %v31 = vld [vmem:[%s1 + $0x30] sm:$0xf]
    %v32 = vld [vmem:[%s1 + $0x34] sm:$0xf]
    %v33 = vld [vmem:[%s1 + $0x38] sm:$0xf]
    %v34 = vld [vmem:[%s1 + $0x3c] sm:$0xf]
    %v35 = vld [vmem:[%s3] sm:$0x1]
    %v36 = vperm.slane %v35, 0
    %v53 = vunpack.c.l.b16 %v19
    %v54 = vunpack.c.l.b16 %v20
    %v55 = vunpack.c.l.b16 %v21
    %v56 = vunpack.c.l.b16 %v22
    %v57 = vunpack.c.l.b16 %v23
    %v58 = vunpack.c.l.b16 %v24
    %v59 = vunpack.c.l.b16 %v25
    %v60 = vunpack.c.l.b16 %v26
    %v61 = vunpack.c.l.b16 %v27
    %v62 = vunpack.c.l.b16 %v28
    %v63 = vunpack.c.l.b16 %v29
    %v64 = vunpack.c.l.b16 %v30
    %v65 = vunpack.c.l.b16 %v31
    %v66 = vunpack.c.l.b16 %v32
    %v67 = vunpack.c.l.b16 %v33
    %v68 = vunpack.c.l.b16 %v34
    %v69 = vpack.c.b16 %v54, %v53
    %v70 = vpack.c.b16 %v56, %v55
    %v71 = vpack.c.b16 %v58, %v57
    %v72 = vpack.c.b16 %v60, %v59
    %v73 = vpack.c.b16 %v62, %v61
    %v74 = vpack.c.b16 %v64, %v63
    %v75 = vpack.c.b16 %v66, %v65
    %v76 = vpack.c.b16 %v68, %v67
    %85 = vmatpush.bf16.msra.mxu0 %v76
    %86 = vmatpush.bf16.msra.mxu0 %v75
    %87 = vmatpush.bf16.msra.mxu0 %v74
    %88 = vmatpush.bf16.msra.mxu0 %v73
    %89 = vmatpush.bf16.msra.mxu0 %v72
    %90 = vmatpush.bf16.msra.mxu0 %v71
    %91 = vmatpush.bf16.msra.mxu0 %v70
    %92 = vmatpush.bf16.msra.mxu0 %v69
    %93 = vmatmul.bf16.gmra.mxu0 %v18
    %v94 = vpop.f32.mrf.mxu0
    %v95 = vadd.f32 %v36, %v94
    %v96 = vpop.f32.mrf.mxu0
    %97 = vdwg.mxu0
    %v98 = vpack.c.bf16 %v95, %v95
    %v99 = vld [vmem:[%s2] sm:$0xf]
    %v100 = vld [vmem:[%s2 + $0x4] sm:$0xf]
    %v101 = vld [vmem:[%s2 + $0x8] sm:$0xf]
    %v102 = vld [vmem:[%s2 + $0xc] sm:$0xf]
    %v103 = vld [vmem:[%s2 + $0x10] sm:$0xf]
    %v104 = vld [vmem:[%s2 + $0x14] sm:$0xf]
    %v105 = vld [vmem:[%s2 + $0x18] sm:$0xf]
    %v106 = vld [vmem:[%s2 + $0x1c] sm:$0xf]
    %v107 = vld [vmem:[%s2 + $0x20] sm:$0xf]
    %v108 = vld [vmem:[%s2 + $0x24] sm:$0xf]
    %v109 = vld [vmem:[%s2 + $0x28] sm:$0xf]
    %v110 = vld [vmem:[%s2 + $0x2c] sm:$0xf]
    %v111 = vld [vmem:[%s2 + $0x30] sm:$0xf]
    %v112 = vld [vmem:[%s2 + $0x34] sm:$0xf]
    %v113 = vld [vmem:[%s2 + $0x38] sm:$0xf]
    %v114 = vld [vmem:[%s2 + $0x3c] sm:$0xf]
    %v115 = vld [vmem:[%s3 + $0x1] sm:$0x1]
    %v116 = vperm.slane %v115, 0
    %v133 = vunpack.c.l.b16 %v99
    %v134 = vunpack.c.l.b16 %v100
    %v135 = vunpack.c.l.b16 %v101
    %v136 = vunpack.c.l.b16 %v102
    %v137 = vunpack.c.l.b16 %v103
    %v138 = vunpack.c.l.b16 %v104
    %v139 = vunpack.c.l.b16 %v105
    %v140 = vunpack.c.l.b16 %v106
    %v141 = vunpack.c.l.b16 %v107
    %v142 = vunpack.c.l.b16 %v108
    %v143 = vunpack.c.l.b16 %v109
    %v144 = vunpack.c.l.b16 %v110
    %v145 = vunpack.c.l.b16 %v111
    %v146 = vunpack.c.l.b16 %v112
    %v147 = vunpack.c.l.b16 %v113
    %v148 = vunpack.c.l.b16 %v114
    %v149 = vpack.c.b16 %v134, %v133
    %v150 = vpack.c.b16 %v136, %v135
    %v151 = vpack.c.b16 %v138, %v137
    %v152 = vpack.c.b16 %v140, %v139
    %v153 = vpack.c.b16 %v142, %v141
    %v154 = vpack.c.b16 %v144, %v143
    %v155 = vpack.c.b16 %v146, %v145
    %v156 = vpack.c.b16 %v148, %v147
    %165 = vmatpush.bf16.msra.mxu0 %v156
    %166 = vmatpush.bf16.msra.mxu0 %v155
    %167 = vmatpush.bf16.msra.mxu0 %v154
    %168 = vmatpush.bf16.msra.mxu0 %v153
    %169 = vmatpush.bf16.msra.mxu0 %v152
    %170 = vmatpush.bf16.msra.mxu0 %v151
    %171 = vmatpush.bf16.msra.mxu0 %v150
    %172 = vmatpush.bf16.msra.mxu0 %v149
    %173 = vmatmul.bf16.gmra.mxu0 %v98
    %v174 = vpop.f32.mrf.mxu0
    %v175 = vadd.f32 %v116, %v174
    %v176 = vpop.f32.mrf.mxu0
    %177 = vdwg.mxu0
    %178 = vst [vmem:[#allocation2] sm:$0xff] %v175
    // Predicated region
    $region18: #{classification1_forward.1} parent=1 // pred_check
      _
    $region19: #{classification1_forward.1} parent=1 // pred_check_branch
      %180 = sbr.rel (0) target = $region21
    $region20: #{classification1_forward.1} parent=1 // pred_region
      %182 = vsyncadd [#allocation3], 0
      %s184 = sshll.u32 [#allocation2], 4
      %s185 = int_to_ptr.vmem [resolvable:$true] %s184
      %s186 = sshll.u32 %s4, 4
      %s187 = int_to_ptr.hbm [resolvable:$true] %s186
      %189 = dma.vmem_to_hbm [thread:$0]  %s185, 128, %s187, [#allocation3]
    $region21: #{classification1_forward.1} parent=1 // pred_fallthru
      _
    // Predicated region
    $region22: #{classification1_forward.1} parent=1 // pred_check
      _
    $region23: #{classification1_forward.1} parent=1 // pred_check_branch
      %191 = sbr.rel (0) target = $region25
    $region24: #{classification1_forward.1} parent=1 // pred_region
      %193 = dma.done [#allocation3], 128
    $region25: #{classification1_forward.1} parent=1 // pred_fallthru
      _
    %194 = vsyncpa [#allocation3], 1

</llo_original>
